<compile_context>
chip_gen: v7x
topology: tpu7x:2x2x1
jax: 0.10.0
libtpu: 0.0.40
codegen_flags: <defaults>
</compile_context>

<pallas_src>
import jax
import jax.numpy as jnp
from jax.experimental import pallas as pl
from jax.experimental.pallas import tpu as pltpu


def _round_up(x, m):
    return ((x + m - 1) // m) * m


def _sublane_multiple(dtype):
    # f32 -> 8, bf16/f16 -> 16, int8/fp8 -> 32 (packed sublane granularity).
    return {4: 8, 2: 16, 1: 32}.get(jnp.dtype(dtype).itemsize, 8)


def _make_aggregator_kernel(num_layers, inv_sqrt_h):
    """inv_sqrt_h uses the *real* hidden dim (pre-padding)."""
    L = num_layers

    def kernel(stack_ref, query_ref, out_ref):
        # stack_ref : (L, Tt, Hp)  per-layer hidden vectors for this token tile
        # query_ref : (1, Hp)      learnable query (zero-padded past real H)
        # out_ref   : (Tt, Hp)     attended per-token representation
        q = query_ref[...].astype(jnp.float32)                       # (1, Hp)

        # ---- Pass 1: per-layer scores. keepdims keeps the reduced H axis as
        # a size-1 trailing (lane) dim, so the later w * x broadcast needs no
        # sublane<->lane relayout.
        scores = []
        for l in range(L):
            x_l = stack_ref[l].astype(jnp.float32)                   # (Tt, Hp)
            s_l = jnp.sum(x_l * q, axis=-1, keepdims=True) * inv_sqrt_h
            scores.append(s_l)                                       # (Tt, 1) f32

        # ---- Softmax across layers (all (Tt,1) f32), stabilized, exact divide
        # (weights stay f32, matching torch F.softmax).
        m = scores[0]
        for l in range(1, L):
            m = jnp.maximum(m, scores[l])
        exps = [jnp.exp(s - m) for s in scores]
        denom = exps[0]
        for l in range(1, L):
            denom = denom + exps[l]
        inv_denom = 1.0 / denom                                      # (Tt, 1)

        # ---- Pass 2: weighted accumulation into ONE (Tt, Hp) f32 accumulator;
        # no (L, Tt, Hp) temporary is ever materialized.
        acc = (exps[0] * inv_denom) * stack_ref[0].astype(jnp.float32)
        for l in range(1, L):
            acc = acc + (exps[l] * inv_denom) * stack_ref[l].astype(jnp.float32)

        out_ref[...] = acc.astype(out_ref.dtype)

    return kernel


def layerwise_token_aggregator(layer_outputs, query, *, token_tile=None,
                               tile_budget_bytes=4 * 1024 * 1024,
                               min_grid_steps=4):
    """Pallas implementation of LayerwiseTokenAggregator.forward.

    layer_outputs: [L, B, S, H] stack of per-layer encoder outputs
    query:         [H]
    returns:       [B, S, H]
    """
    L, B, S, H = layer_outputs.shape
    T = B * S
    dtype = layer_outputs.dtype
    itemsize = jnp.dtype(dtype).itemsize
    sub = _sublane_multiple(dtype)

    # Native layout: collapse (B, S) -> T, no data movement.
    x = layer_outputs.reshape(L, T, H)

    # Lane-dense H. The zero-pad is required for correctness of the score
    # reduce over H when H % 128 != 0 (rare: toy sizes only); no copy otherwise.
    Hp = H if H % 128 == 0 else _round_up(H, 128)
    if Hp != H:
        x = jnp.pad(x, ((0, 0), (0, 0), (0, Hp - H)))
        q2d = jnp.pad(query, (0, Hp - H)).reshape(1, Hp)
    else:
        q2d = query.reshape(1, Hp)

    # Token tile: VMEM budget per input block (pipeline double-buffers it),
    # capped so the grid keeps >= min_grid_steps steps when T allows (both v7x
    # TensorCores get work; DMA pipeline stays busy), dtype-aware sublane
    # rounding. No token-axis padding: ragged last tile handled by Pallas.
    if token_tile is None:
        budget_tile = tile_budget_bytes // max(1, L * Hp * itemsize)
        steps_tile = -(-T // min_grid_steps)                 # ceil(T / steps)
        token_tile = min(budget_tile, max(steps_tile, sub), max(T, sub))
    token_tile = max(sub, (int(token_tile) // sub) * sub)

    grid = (pl.cdiv(T, token_tile),)

    # VMEM accounting: double-buffered input/output blocks + f32 accumulator
    # + per-layer score/exp scratch + query. Clamp to [32, 48] MiB (safe on
    # v7x's 64 MiB VMEM, trivially within v5e/v6e's 128 MiB).
    in_block = L * token_tile * Hp * itemsize
    out_block = token_tile * Hp * itemsize
    acc_bytes = token_tile * Hp * 4
    score_bytes = 2 * L * token_tile * 64       # (Tt,1) f32 tiles, scores+exps
    vmem_needed = 2 * in_block + 2 * out_block + acc_bytes + score_bytes + 2 * Hp * 4
    vmem_limit = int(min(max(2 * vmem_needed, 32 * 1024 * 1024), 48 * 1024 * 1024))

    cost = pl.CostEstimate(
        flops=4 * L * T * Hp,
        transcendentals=L * T,
        bytes_accessed=(L * T * Hp + T * Hp + Hp) * itemsize,
    )

    out = pl.pallas_call(
        _make_aggregator_kernel(L, 1.0 / (H ** 0.5)),
        out_shape=jax.ShapeDtypeStruct((T, Hp), dtype),
        grid_spec=pltpu.PrefetchScalarGridSpec(
            num_scalar_prefetch=0,
            grid=grid,
            in_specs=[
                pl.BlockSpec((L, token_tile, Hp), lambda i: (0, i, 0)),
                pl.BlockSpec((1, Hp), lambda i: (0, 0)),
            ],
            out_specs=pl.BlockSpec((token_tile, Hp), lambda i: (i, 0)),
        ),
        compiler_params=pltpu.CompilerParams(
            dimension_semantics=("parallel",),
            vmem_limit_bytes=vmem_limit,
        ),
        cost_estimate=cost,
    )(x, q2d)

    if Hp != H:
        out = out[:, :H]
    return out.reshape(B, S, H)


def at_multilingual_embedding_forward(hidden_states, attention_mask, query):
    """Mirrors ATMultilingualEmbeddingModel.forward:
       returns (layer-attention embeddings [B,S,H], attention_mask [B,S])."""
    base_embeddings = layerwise_token_aggregator(hidden_states, query)
    return base_embeddings, attention_mask


def _reference(hidden_states, query):
    # Pure-JAX reference of LayerwiseTokenAggregator for sanity checking.
    L, B, S, H = hidden_states.shape
    x = jnp.transpose(hidden_states, (1, 2, 0, 3)).reshape(-1, L, H)
    scores = jnp.einsum('h,tlh->tl', query, x) / (H ** 0.5)
    w = jax.nn.softmax(scores, axis=-1)
    out = jnp.einsum('tl,tlh->th', w, x)
    return out.reshape(B, S, H)


if __name__ == "__main__":
    # Small synthetic shapes consistent with the module's forward:
    #   num_layers=4 encoder layers, batch=2, seq=9, hidden=32.
    # (seq=9 -> T=18 so the grid is multi-step AND the last tile is ragged,
    # exercising the no-token-pad path.)
    L, B, S, H = 4, 2, 9, 32

    key = jax.random.PRNGKey(0)
    k_hs, k_q = jax.random.split(key)

    # Synthetic per-layer encoder hidden states (stands in for
    # output.hidden_states[1:]) and a full attention mask.
    hidden_states = jax.random.normal(k_hs, (L, B, S, H), dtype=jnp.float32)
    attention_mask = jnp.ones((B, S), dtype=jnp.int32)

    # Learnable aggregator query (torch.randn(hidden_dim) analogue).
    query = jax.random.normal(k_q, (H,), dtype=jnp.float32)

    emb, mask = at_multilingual_embedding_forward(hidden_states, attention_mask, query)
    emb = jax.block_until_ready(emb)
    mask = jax.block_until_ready(mask)

    ref = _reference(hidden_states, query)
    assert emb.shape == (B, S, H)
    assert mask.shape == (B, S)
    assert jnp.allclose(emb, ref, atol=1e-4, rtol=1e-4), "mismatch vs reference"

    print("KERNEL_OK")
</pallas_src>

<mosaic_0001>
module attributes {stable_mosaic.version = 11 : i64} {
  func.func @kernel(%arg0: i32, %arg1: memref<4x8x128xf32, #tpu.memory_space<vmem>>, %arg2: memref<1x128xf32, #tpu.memory_space<vmem>>, %arg3: memref<8x128xf32, #tpu.memory_space<vmem>>) attributes {dimension_semantics = [#tpu.dimension_semantics<parallel>], iteration_bounds = array<i64: 3>, scalar_prefetch = 0 : i64, scratch_operands = 0 : i64, tpu.core_type = #tpu.core_type<tc>, window_params = [{transform_indices = @transform_0, window_bounds = array<i64: 4, 8, 128>}, {pipeline_mode = #tpu.pipeline_mode<synchronous>, transform_indices = @transform_1, window_bounds = array<i64: 1, 128>}, {transform_indices = @transform_2, window_bounds = array<i64: 8, 128>}]} {
    %c0 = arith.constant 0 : index
    %c0_0 = arith.constant 0 : index
    %0 = vector.load %arg2[%c0, %c0_0] : memref<1x128xf32, #tpu.memory_space<vmem>>, vector<1x128xf32>
    %c0_1 = arith.constant 0 : index
    %c0_2 = arith.constant 0 : index
    %c0_3 = arith.constant 0 : index
    %1 = vector.load %arg1[%c0_1, %c0_2, %c0_3] : memref<4x8x128xf32, #tpu.memory_space<vmem>>, vector<1x8x128xf32>
    %2 = vector.shape_cast %1 : vector<1x8x128xf32> to vector<8x128xf32>
    %3 = vector.broadcast %0 : vector<1x128xf32> to vector<8x128xf32>
    %4 = arith.mulf %2, %3 : vector<8x128xf32>
    %cst = arith.constant dense<0.000000e+00> : vector<8xf32>
    %5 = vector.multi_reduction <add>, %4, %cst [1] : vector<8x128xf32> to vector<8xf32>
    %6 = vector.shape_cast %5 : vector<8xf32> to vector<8x1xf32>
    %cst_4 = arith.constant 0.176776692 : f32
    %7 = vector.broadcast %cst_4 : f32 to vector<8x1xf32>
    %8 = arith.mulf %6, %7 : vector<8x1xf32>
    %c1 = arith.constant 1 : index
    %c0_5 = arith.constant 0 : index
    %c0_6 = arith.constant 0 : index
    %9 = vector.load %arg1[%c1, %c0_5, %c0_6] : memref<4x8x128xf32, #tpu.memory_space<vmem>>, vector<1x8x128xf32>
    %10 = vector.shape_cast %9 : vector<1x8x128xf32> to vector<8x128xf32>
    %11 = vector.broadcast %0 : vector<1x128xf32> to vector<8x128xf32>
    %12 = arith.mulf %10, %11 : vector<8x128xf32>
    %cst_7 = arith.constant dense<0.000000e+00> : vector<8xf32>
    %13 = vector.multi_reduction <add>, %12, %cst_7 [1] : vector<8x128xf32> to vector<8xf32>
    %14 = vector.shape_cast %13 : vector<8xf32> to vector<8x1xf32>
    %cst_8 = arith.constant 0.176776692 : f32
    %15 = vector.broadcast %cst_8 : f32 to vector<8x1xf32>
    %16 = arith.mulf %14, %15 : vector<8x1xf32>
    %c2 = arith.constant 2 : index
    %c0_9 = arith.constant 0 : index
    %c0_10 = arith.constant 0 : index
    %17 = vector.load %arg1[%c2, %c0_9, %c0_10] : memref<4x8x128xf32, #tpu.memory_space<vmem>>, vector<1x8x128xf32>
    %18 = vector.shape_cast %17 : vector<1x8x128xf32> to vector<8x128xf32>
    %19 = vector.broadcast %0 : vector<1x128xf32> to vector<8x128xf32>
    %20 = arith.mulf %18, %19 : vector<8x128xf32>
    %cst_11 = arith.constant dense<0.000000e+00> : vector<8xf32>
    %21 = vector.multi_reduction <add>, %20, %cst_11 [1] : vector<8x128xf32> to vector<8xf32>
    %22 = vector.shape_cast %21 : vector<8xf32> to vector<8x1xf32>
    %cst_12 = arith.constant 0.176776692 : f32
    %23 = vector.broadcast %cst_12 : f32 to vector<8x1xf32>
    %24 = arith.mulf %22, %23 : vector<8x1xf32>
    %c3 = arith.constant 3 : index
    %c0_13 = arith.constant 0 : index
    %c0_14 = arith.constant 0 : index
    %25 = vector.load %arg1[%c3, %c0_13, %c0_14] : memref<4x8x128xf32, #tpu.memory_space<vmem>>, vector<1x8x128xf32>
    %26 = vector.shape_cast %25 : vector<1x8x128xf32> to vector<8x128xf32>
    %27 = vector.broadcast %0 : vector<1x128xf32> to vector<8x128xf32>
    %28 = arith.mulf %26, %27 : vector<8x128xf32>
    %cst_15 = arith.constant dense<0.000000e+00> : vector<8xf32>
    %29 = vector.multi_reduction <add>, %28, %cst_15 [1] : vector<8x128xf32> to vector<8xf32>
    %30 = vector.shape_cast %29 : vector<8xf32> to vector<8x1xf32>
    %cst_16 = arith.constant 0.176776692 : f32
    %31 = vector.broadcast %cst_16 : f32 to vector<8x1xf32>
    %32 = arith.mulf %30, %31 : vector<8x1xf32>
    %33 = arith.maximumf %8, %16 : vector<8x1xf32>
    %34 = arith.maximumf %33, %24 : vector<8x1xf32>
    %35 = arith.maximumf %34, %32 : vector<8x1xf32>
    %36 = arith.subf %8, %35 : vector<8x1xf32>
    %37 = math.exp %36 : vector<8x1xf32>
    %38 = arith.subf %16, %35 : vector<8x1xf32>
    %39 = math.exp %38 : vector<8x1xf32>
    %40 = arith.subf %24, %35 : vector<8x1xf32>
    %41 = math.exp %40 : vector<8x1xf32>
    %42 = arith.subf %32, %35 : vector<8x1xf32>
    %43 = math.exp %42 : vector<8x1xf32>
    %44 = arith.addf %37, %39 : vector<8x1xf32>
    %45 = arith.addf %44, %41 : vector<8x1xf32>
    %46 = arith.addf %45, %43 : vector<8x1xf32>
    %cst_17 = arith.constant 1.000000e+00 : f32
    %47 = vector.broadcast %cst_17 : f32 to vector<8x1xf32>
    %48 = arith.divf %47, %46 : vector<8x1xf32>
    %49 = arith.mulf %37, %48 : vector<8x1xf32>
    %c0_18 = arith.constant 0 : index
    %c0_19 = arith.constant 0 : index
    %c0_20 = arith.constant 0 : index
    %50 = vector.load %arg1[%c0_18, %c0_19, %c0_20] : memref<4x8x128xf32, #tpu.memory_space<vmem>>, vector<1x8x128xf32>
    %51 = vector.shape_cast %50 : vector<1x8x128xf32> to vector<8x128xf32>
    %52 = vector.broadcast %49 : vector<8x1xf32> to vector<8x128xf32>
    %53 = arith.mulf %52, %51 : vector<8x128xf32>
    %54 = arith.mulf %39, %48 : vector<8x1xf32>
    %c1_21 = arith.constant 1 : index
    %c0_22 = arith.constant 0 : index
    %c0_23 = arith.constant 0 : index
    %55 = vector.load %arg1[%c1_21, %c0_22, %c0_23] : memref<4x8x128xf32, #tpu.memory_space<vmem>>, vector<1x8x128xf32>
    %56 = vector.shape_cast %55 : vector<1x8x128xf32> to vector<8x128xf32>
    %57 = vector.broadcast %54 : vector<8x1xf32> to vector<8x128xf32>
    %58 = arith.mulf %57, %56 : vector<8x128xf32>
    %59 = arith.addf %53, %58 : vector<8x128xf32>
    %60 = arith.mulf %41, %48 : vector<8x1xf32>
    %c2_24 = arith.constant 2 : index
    %c0_25 = arith.constant 0 : index
    %c0_26 = arith.constant 0 : index
    %61 = vector.load %arg1[%c2_24, %c0_25, %c0_26] : memref<4x8x128xf32, #tpu.memory_space<vmem>>, vector<1x8x128xf32>
    %62 = vector.shape_cast %61 : vector<1x8x128xf32> to vector<8x128xf32>
    %63 = vector.broadcast %60 : vector<8x1xf32> to vector<8x128xf32>
    %64 = arith.mulf %63, %62 : vector<8x128xf32>
    %65 = arith.addf %59, %64 : vector<8x128xf32>
    %66 = arith.mulf %43, %48 : vector<8x1xf32>
    %c3_27 = arith.constant 3 : index
    %c0_28 = arith.constant 0 : index
    %c0_29 = arith.constant 0 : index
    %67 = vector.load %arg1[%c3_27, %c0_28, %c0_29] : memref<4x8x128xf32, #tpu.memory_space<vmem>>, vector<1x8x128xf32>
    %68 = vector.shape_cast %67 : vector<1x8x128xf32> to vector<8x128xf32>
    %69 = vector.broadcast %66 : vector<8x1xf32> to vector<8x128xf32>
    %70 = arith.mulf %69, %68 : vector<8x128xf32>
    %71 = arith.addf %65, %70 : vector<8x128xf32>
    %c0_30 = arith.constant 0 : index
    %c0_31 = arith.constant 0 : index
    %72 = vector.load %arg3[%c0_30, %c0_31] : memref<8x128xf32, #tpu.memory_space<vmem>>, vector<8x128xf32>
    tpu.vector_store %arg3[%c0_30, %c0_31], %71 {strides = array<i32>} : memref<8x128xf32, #tpu.memory_space<vmem>>, vector<8x128xf32>,
    return
  }
  func.func @transform_0(%arg0: i32) -> (i32, i32, i32) {
    %c0_i32 = arith.constant 0 : i32
    %c0_i32_0 = arith.constant 0 : i32
    %c0_i32_1 = arith.constant 0 : i32
    return %c0_i32, %arg0, %c0_i32_0 : i32, i32, i32
  }
  func.func @transform_1(%arg0: i32) -> (i32, i32) {
    %c0_i32 = arith.constant 0 : i32
    %c0_i32_0 = arith.constant 0 : i32
    %c0_i32_1 = arith.constant 0 : i32
    return %c0_i32, %c0_i32_0 : i32, i32
  }
  func.func @transform_2(%arg0: i32) -> (i32, i32) {
    %c0_i32 = arith.constant 0 : i32
    %c0_i32_0 = arith.constant 0 : i32
    return %arg0, %c0_i32 : i32, i32
  }
}

</mosaic_0001>

<llo_original>
// kernel: tpu_custom_call.1
$region0: #{tpu_custom_call.1}
  #allocation0 [shape = 'u32[]', space=smem, size = 0x4, offset = 0x4, fixed_abs, tag = 'smem constant byte address 0x4 - core index']
  #allocation1 [shape = 'u32[144,128]{1,0:T(1,128)}', space=vmem, size = 0x12000, scoped, tag = 'internal scratch']
  %s0 = inlined_call_operand.vmem [shape: f32[4,18,128], index: 0, kind: input, shape index: {}]
  %s1 = inlined_call_operand.vmem [shape: f32[1,128], index: 1, kind: input, shape index: {}]
  %s2 = inlined_call_operand.hbm [shape: f32[18,128], index: 2, kind: output, shape index: {}]
  %s3 = sld [smem:[#allocation0]]
  $region79: #{tpu_custom_call.1} parent=0
    _
  %s5 = ssub.s32 1, %s3
  %s6 = scalar_select 0, %s5, %s3
  $region1: #{tpu_custom_call.1} parent=0
    #allocation2 [shape = 'u8[32768]{0}', space=vmem, size = 0x8000, scoped, tag = 'input window, operand 0']
    #allocation3 [shape = 'u8[8192]{0}', space=vmem, size = 0x2000, scoped, tag = 'output window, operand 0']
    #allocation4 [shape = 's32[2]{0}', space=sflag, size = 0x8, scoped, tag = 'scoped memory for tpu_custom_call.1']
    %7 = vsyncpa [#allocation4], 0
    %s8 = scalar_lea.sflag [#allocation4], 1
    %9 = vsyncpa %s8, 0
    loop: start=0, step=1, limit=5
    $region2: #{tpu_custom_call.1} parent=1 // loop_pre_header
      _
    $region3: #{tpu_custom_call.1} parent=1 // loop_header
      %s11 = sphi 0, %s15
      %p12 = scmp.ge.s32.totalorder %s11, 5
      %s21 = sphi 0, %s23
      %s24 = sphi 0, %s21
      %s25 = sphi 0, %s24
      %s41 = sphi 0, %s25
      %s45 = sphi 0, %s45
      %s47 = sphi 0, %s45
      %s48 = sphi 0, %s47
      %s62 = sphi 0, %s48
      %s68 = sphi 0, %s70
      %s71 = sphi 0, %s68
      %s72 = sphi 0, %s71
      %s88 = sphi 0, %s72
    $region4: #{tpu_custom_call.1} parent=1 // loop_header_branch
      %14 = sbr.rel (%p12) target = $region8
    $region5: #{tpu_custom_call.1} parent=1 // loop_body
      %s16 = ssub.s32 %s11, 1
      %s17 = ssub.s32 %s11, 2
      %s18 = sadd.s32 %s11, 1
      %s19 = ssub.s32 %s11, %s18
      %p20 = scmp.eq.s32.totalorder %s19, 0
      %s22 = sadd.s32 %s21, 1
      %s23 = scalar_select %p20, %s21, %s22
      %p26 = pneg %p20
      %p27 = scmp.eq.s32.totalorder %s11, 2
      %p28 = por %p26, %p27
      %p29 = scmp.ne.s32.totalorder %s21, %s24
      %p30 = scmp.eq.s32.totalorder %s11, 0
      %p31 = por %p29, %p30
      %p32 = scmp.ne.s32.totalorder %s21, %s24
      %p33 = scmp.eq.s32.totalorder %s16, 2
      %p34 = por %p32, %p33
      %p35 = scmp.ne.s32.totalorder %s24, %s25
      %p36 = scmp.eq.s32.totalorder %s16, 0
      %p37 = por %p35, %p36
      %p38 = scmp.ne.s32.totalorder %s24, %s25
      %p39 = scmp.eq.s32.totalorder %s17, 2
      %p40 = por %p38, %p39
      %p42 = scmp.ne.s32.totalorder %s25, %s41
      %p43 = scmp.eq.s32.totalorder %s17, 0
      %p44 = por %p42, %p43
      %s46 = sadd.s32 %s45, 1
      %p49 = scmp.eq.s32.totalorder %s11, 2
      %p50 = scmp.ne.s32.totalorder %s45, %s47
      %p51 = scmp.eq.s32.totalorder %s11, 0
      %p52 = por %p50, %p51
      %p53 = scmp.ne.s32.totalorder %s45, %s47
      %p54 = scmp.eq.s32.totalorder %s16, 2
      %p55 = por %p53, %p54
      %p56 = scmp.ne.s32.totalorder %s47, %s48
      %p57 = scmp.eq.s32.totalorder %s16, 0
      %p58 = por %p56, %p57
      %p59 = scmp.ne.s32.totalorder %s47, %s48
      %p60 = scmp.eq.s32.totalorder %s17, 2
      %p61 = por %p59, %p60
      %p63 = scmp.ne.s32.totalorder %s48, %s62
      %p64 = scmp.eq.s32.totalorder %s17, 0
      %p65 = por %p63, %p64
      %s66 = ssub.s32 %s11, %s18
      %p67 = scmp.eq.s32.totalorder %s66, 0
      %s69 = sadd.s32 %s68, 1
      %s70 = scalar_select %p67, %s68, %s69
      %p73 = pneg %p67
      %p74 = scmp.eq.s32.totalorder %s11, 2
      %p75 = por %p73, %p74
      %p76 = scmp.ne.s32.totalorder %s68, %s71
      %p77 = scmp.eq.s32.totalorder %s11, 0
      %p78 = por %p76, %p77
      %p79 = scmp.ne.s32.totalorder %s68, %s71
      %p80 = scmp.eq.s32.totalorder %s16, 2
      %p81 = por %p79, %p80
      %p82 = scmp.ne.s32.totalorder %s71, %s72
      %p83 = scmp.eq.s32.totalorder %s16, 0
      %p84 = por %p82, %p83
      %p85 = scmp.ne.s32.totalorder %s71, %s72
      %p86 = scmp.eq.s32.totalorder %s17, 2
      %p87 = por %p85, %p86
      %p89 = scmp.ne.s32.totalorder %s72, %s88
      %p90 = scmp.eq.s32.totalorder %s17, 0
      %p91 = por %p89, %p90
      %p92 = scmp.le.s32.totalorder 1, %s11
      %p93 = scmp.lt.s32.totalorder %s11, 4
      %p94 = pnand %p92, %p93
      %p95 = pneg %p94
      // Predicated region
      $region9: #{tpu_custom_call.1} parent=5 // pred_check
        _
      $region10: #{tpu_custom_call.1} parent=5 // pred_check_branch
        %97 = sbr.rel (%p94) target = $region12
      $region11: #{tpu_custom_call.1} parent=5 // pred_region
        %s98 = ssub.s32 %s11, 1
        // Predicated region
        $region13: #{tpu_custom_call.1} parent=11 // pred_check
          %p99 = pneg %p58
        $region14: #{tpu_custom_call.1} parent=11 // pred_check_branch
          %101 = sbr.rel (%p99) target = $region16
        $region15: #{tpu_custom_call.1} parent=11 // pred_region
          _
        $region16: #{tpu_custom_call.1} parent=11 // pred_fallthru
          _
      $region12: #{tpu_custom_call.1} parent=5 // pred_fallthru
        _
      %p102 = scmp.lt.s32.totalorder %s11, 3
      // Predicated region
      $region17: #{tpu_custom_call.1} parent=5 // pred_check
        %p103 = pneg %p102
      $region18: #{tpu_custom_call.1} parent=5 // pred_check_branch
        %105 = sbr.rel (%p103) target = $region20
      $region19: #{tpu_custom_call.1} parent=5 // pred_region
        // Predicated region
        $region21: #{tpu_custom_call.1} parent=19 // pred_check
          %p106 = pneg %p31
        $region22: #{tpu_custom_call.1} parent=19 // pred_check_branch
          %108 = sbr.rel (%p106) target = $region24
        $region23: #{tpu_custom_call.1} parent=19 // pred_region
          %s109 = sand.u32 %s21, 1
          %s110 = sand.u32 %s21, 1
          %s111 = smul.addr %s110, 32
          %s112 = scalar_lea.vmem [#allocation2], %s111
          %s113 = smul.addr %s11, 8
          %s114 = scalar_lea.vmem %s0, %s113
          // Predicated region
          $region25: #{tpu_custom_call.1} parent=23 // pred_check
            _
          $region26: #{tpu_custom_call.1} parent=23 // pred_check_branch
            %116 = sbr.rel (0) target = $region28
          $region27: #{tpu_custom_call.1} parent=23 // pred_region
            // Predicated region
            $region29: #{tpu_custom_call.1} parent=27 // pred_check
              _
            $region30: #{tpu_custom_call.1} parent=27 // pred_check_branch
              %118 = sbr.rel (0) target = $region32
            $region31: #{tpu_custom_call.1} parent=27 // pred_region
              // Predicated region
              $region44: #{tpu_custom_call.1} parent=31 // pred_check
                _
              $region45: #{tpu_custom_call.1} parent=31 // pred_check_branch
                %139 = sbr.rel (0) target = $region47
              $region46: #{tpu_custom_call.1} parent=31 // pred_region
                loop: start=0, step=1, limit=1
                $region48: #{tpu_custom_call.1} parent=46 // loop_pre_header
                  _
                $region49: #{tpu_custom_call.1} parent=46 // loop_header
                  %s141 = sphi 0, %s145
                  %p142 = scmp.ge.s32.totalorder %s141, 1
                  %s146 = sphi %s114, %s114
                  %s147 = sphi %s112, %s112
                $region50: #{tpu_custom_call.1} parent=46 // loop_header_branch
                  %144 = sbr.rel (%p142) target = $region54
                $region51: #{tpu_custom_call.1} parent=46 // loop_body
                  %v148 = vld [vmem:[%s146] sm:$0xff]
                  %149 = vst [vmem:[%s147] sm:$0xff] %v148
                  %v150 = vld [vmem:[%s146 + $0x18] sm:$0xff]
                  %151 = vst [vmem:[%s147 + $0x8] sm:$0xff] %v150
                  %v152 = vld [vmem:[%s146 + $0x30] sm:$0xff]
                  %153 = vst [vmem:[%s147 + $0x10] sm:$0xff] %v152
                  %v154 = vld [vmem:[%s146 + $0x48] sm:$0xff]
                  %155 = vst [vmem:[%s147 + $0x18] sm:$0xff] %v154
                $region52: #{tpu_custom_call.1} parent=46 // loop_footer
                  %s145 = sadd.s32 1, %s141
                $region53: #{tpu_custom_call.1} parent=46 // loop_footer_branch
                  %140 = sbr.rel target = $region49
                $region54: #{tpu_custom_call.1} parent=46 // loop_exit
                  _
              $region47: #{tpu_custom_call.1} parent=31 // pred_fallthru
                _
              // Predicated region
              $region55: #{tpu_custom_call.1} parent=31 // pred_check
                _
              $region56: #{tpu_custom_call.1} parent=31 // pred_check_branch
                %157 = sbr.rel target = $region58
              $region57: #{tpu_custom_call.1} parent=31 // pred_region
                _
              $region58: #{tpu_custom_call.1} parent=31 // pred_fallthru
                _
            $region32: #{tpu_custom_call.1} parent=27 // pred_fallthru
              _
            // Predicated region
            $region33: #{tpu_custom_call.1} parent=27 // pred_check
              _
            $region34: #{tpu_custom_call.1} parent=27 // pred_check_branch
              %120 = sbr.rel target = $region36
            $region35: #{tpu_custom_call.1} parent=27 // pred_region
              loop: start=0, step=1, limit=1
              $region37: #{tpu_custom_call.1} parent=35 // loop_pre_header
                _
              $region38: #{tpu_custom_call.1} parent=35 // loop_header
                %s123 = sphi 0, %s127
                %p124 = scmp.ge.s32.totalorder %s123, 1
                %s128 = sphi %s114, %s114
                %s129 = sphi %s112, %s112
              $region39: #{tpu_custom_call.1} parent=35 // loop_header_branch
                %126 = sbr.rel (%p124) target = $region43
              $region40: #{tpu_custom_call.1} parent=35 // loop_body
                %v130 = vld [vmem:[%s128] sm:$0xff]
                %131 = vst [vmem:[%s129] sm:$0xff] %v130
                %v132 = vld [vmem:[%s128 + $0x18] sm:$0xff]
                %133 = vst [vmem:[%s129 + $0x8] sm:$0xff] %v132
                %v134 = vld [vmem:[%s128 + $0x30] sm:$0xff]
                %135 = vst [vmem:[%s129 + $0x10] sm:$0xff] %v134
                %v136 = vld [vmem:[%s128 + $0x48] sm:$0xff]
                %137 = vst [vmem:[%s129 + $0x18] sm:$0xff] %v136
              $region41: #{tpu_custom_call.1} parent=35 // loop_footer
                %s127 = sadd.s32 1, %s123
              $region42: #{tpu_custom_call.1} parent=35 // loop_footer_branch
                %122 = sbr.rel target = $region38
              $region43: #{tpu_custom_call.1} parent=35 // loop_exit
                _
            $region36: #{tpu_custom_call.1} parent=27 // pred_fallthru
              _
          $region28: #{tpu_custom_call.1} parent=23 // pred_fallthru
            _
          %158 = vnop
        $region24: #{tpu_custom_call.1} parent=19 // pred_fallthru
          _
      $region20: #{tpu_custom_call.1} parent=5 // pred_fallthru
        _
      %p159 = scmp.le.s32.totalorder 1, %s11
      %p160 = scmp.lt.s32.totalorder %s11, 4
      %p161 = pnand %p159, %p160
      %p162 = pneg %p161
      // Predicated region
      $region59: #{tpu_custom_call.1} parent=5 // pred_check
        _
      $region60: #{tpu_custom_call.1} parent=5 // pred_check_branch
        %164 = sbr.rel (%p161) target = $region62
      $region61: #{tpu_custom_call.1} parent=5 // pred_region
        %s165 = ssub.s32 %s11, 1
        %s166 = sand.u32 %s24, 1
        %s167 = sand.u32 %s24, 1
        %s168 = smul.addr %s167, 32
        %s169 = scalar_lea.vmem [#allocation2], %s168
        // Predicated region
        $region63: #{tpu_custom_call.1} parent=61 // pred_check
          %p170 = pneg %p37
        $region64: #{tpu_custom_call.1} parent=61 // pred_check_branch
          %172 = sbr.rel (%p170) target = $region66
        $region65: #{tpu_custom_call.1} parent=61 // pred_region
          _
        $region66: #{tpu_custom_call.1} parent=61 // pred_fallthru
          _
        %s173 = sand.u32 %s24, 1
        %s174 = sand.u32 %s24, 1
        %s175 = smul.addr %s174, 32
        %s176 = scalar_lea.vmem [#allocation2], %s175
        %p177 = pneg %p37
        %p178 = pneg %p34
        %p179 = pneg %p58
        %p180 = pneg %p55
        %p181 = pneg %p84
        %p182 = pneg %p81
        %s183 = sand.u32 %s71, 1
        %s184 = scalar_lea.sflag [#allocation4], %s183
        %s185 = sand.u32 %s71, 1
        %s186 = smul.addr %s185, 8
        %s187 = scalar_lea.vmem [#allocation3], %s186
        %v188 = vld [vmem:[%s1] sm:$0x1]
        %v189 = vld [vmem:[%s169] sm:$0xff]
        %v191 = vlaneseq
        %v192 = vshrl.u32 %v191, 7
        %v193 = vsub.s32 0, %v192
        %v194 = vrot.slane %v188, %v193
        %v196 = vmul.f32 %v189, %v194
        %197 = vadd.xlane.f32.xlu0 %v196
        %v198 = vpop.xlane.xlu0 %197
        %v199 = vmul.f32 %v198, 0.17677669
        %s200 = scalar_lea.vmem %s169, 8 [#allocation2]
        %v201 = vld [vmem:[%s200] sm:$0xff]
        %v202 = vmul.f32 %v201, %v194
        %203 = vadd.xlane.f32.xlu0 %v202
        %v204 = vpop.xlane.xlu0 %203
        %v205 = vmul.f32 %v204, 0.17677669
        %s206 = scalar_lea.vmem %s169, 16 [#allocation2]
        %v207 = vld [vmem:[%s206] sm:$0xff]
        %v208 = vmul.f32 %v207, %v194
        %209 = vadd.xlane.f32.xlu0 %v208
        %v210 = vpop.xlane.xlu0 %209
        %v211 = vmul.f32 %v210, 0.17677669
        %s212 = scalar_lea.vmem %s169, 24 [#allocation2]
        %v213 = vld [vmem:[%s212] sm:$0xff]
        %v214 = vmul.f32 %v213, %v194
        %215 = vadd.xlane.f32.xlu0 %v214
        %v216 = vpop.xlane.xlu0 %215
        %v217 = vmul.f32 %v216, 0.17677669
        %v218 = vmax.f32 %v199, %v205
        %v219 = vmax.f32 %v218, %v211
        %v220 = vmax.f32 %v219, %v217
        %v221 = vsub.f32 %v199, %v220
        %v222 = vmul.f32 %v221, 1.442695
        %v223 = vpow.pop %v222
        %v224 = vsub.f32 %v205, %v220
        %v225 = vmul.f32 %v224, 1.442695
        %v226 = vpow.pop %v225
        %v227 = vsub.f32 %v211, %v220
        %v228 = vmul.f32 %v227, 1.442695
        %v229 = vpow.pop %v228
        %v230 = vsub.f32 %v217, %v220
        %v231 = vmul.f32 %v230, 1.442695
        %v232 = vpow.pop %v231
        %v233 = vadd.f32 %v223, %v226
        %v234 = vadd.f32 %v233, %v229
        %v235 = vadd.f32 %v234, %v232
        %v236 = vrcp.pop %v235
        %v237 = vmul.f32 1.0, %v236
        %v238 = vmul.f32 %v223, %v237
        %v239 = vmul.f32 %v238, %v189
        %v240 = vmul.f32 %v226, %v237
        %v241 = vmul.f32 %v240, %v201
        %v242 = vadd.f32 %v239, %v241
        %v243 = vmul.f32 %v229, %v237
        %v244 = vmul.f32 %v243, %v207
        %v245 = vadd.f32 %v242, %v244
        %v246 = vmul.f32 %v232, %v237
        %v247 = vmul.f32 %v246, %v213
        %v248 = vadd.f32 %v245, %v247
        %249 = vst [vmem:[%s187] sm:$0xff] %v248
        %s250 = sand.u32 %s71, 1
        %s251 = scalar_lea.sflag [#allocation4], %s250
        %s252 = sand.u32 %s71, 1
        %s253 = smul.addr %s252, 8
        %s254 = scalar_lea.vmem [#allocation3], %s253
        // Predicated region
        $region67: #{tpu_custom_call.1} parent=61 // pred_check
          %p255 = pneg %p81
        $region68: #{tpu_custom_call.1} parent=61 // pred_check_branch
          %257 = sbr.rel (%p255) target = $region70
        $region69: #{tpu_custom_call.1} parent=61 // pred_region
          %s259 = ssub.s32 128, 128
          %260 = vsyncadd %s251, %s259
          %s261 = smul.addr %s16, 128
          %s262 = scalar_lea.hbm %s2, %s261
          %s264 = sshll.u32 %s254, 4
          %s265 = int_to_ptr.vmem [resolvable:$true] %s264
          %267 = dma.vmem_to_hbm [thread:$0]  %s265, 128, %s262, %s251
        $region70: #{tpu_custom_call.1} parent=61 // pred_fallthru
          _
      $region62: #{tpu_custom_call.1} parent=5 // pred_fallthru
        _
      %p268 = scmp.le.s32.totalorder 2, %s11
      // Predicated region
      $region71: #{tpu_custom_call.1} parent=5 // pred_check
        %p269 = pneg %p268
      $region72: #{tpu_custom_call.1} parent=5 // pred_check_branch
        %271 = sbr.rel (%p269) target = $region74
      $region73: #{tpu_custom_call.1} parent=5 // pred_region
        %s272 = ssub.s32 %s11, 2
        // Predicated region
        $region75: #{tpu_custom_call.1} parent=73 // pred_check
          %p273 = pneg %p87
        $region76: #{tpu_custom_call.1} parent=73 // pred_check_branch
          %275 = sbr.rel (%p273) target = $region78
        $region77: #{tpu_custom_call.1} parent=73 // pred_region
          %s276 = sand.u32 %s72, 1
          %s277 = scalar_lea.sflag [#allocation4], %s276
          %s278 = sand.u32 %s72, 1
          %s279 = smul.addr %s278, 8
          %s280 = scalar_lea.vmem [#allocation3], %s279
          %281 = dma.done %s277, 128
        $region78: #{tpu_custom_call.1} parent=73 // pred_fallthru
          _
      $region74: #{tpu_custom_call.1} parent=5 // pred_fallthru
        _
    $region6: #{tpu_custom_call.1} parent=1 // loop_footer
      %s15 = sadd.s32 1, %s11
    $region7: #{tpu_custom_call.1} parent=1 // loop_footer_branch
      %10 = sbr.rel target = $region3
    $region8: #{tpu_custom_call.1} parent=1 // loop_exit
      _
    %282 = vsyncpa [#allocation4], 1
    %s283 = scalar_lea.sflag [#allocation4], 1
    %284 = vsyncpa %s283, 1

</llo_original>
